<compile_context>
chip_gen: v7x
topology: tpu7x:2x2x1
jax: 0.10.0
libtpu: 0.0.40
codegen_flags: <defaults>
</compile_context>

<pallas_src>
import math

import jax
import jax.numpy as jnp
from jax import lax
from jax.experimental import pallas as pl
from jax.experimental.pallas import tpu as pltpu

NEG_INF = -1e30  # finite "minus infinity" (avoids inf-inf -> NaN hazards)


# ----------------------------- kernel helpers -----------------------------

def _layernorm(x, w, b, eps=1e-5):
    mu = jnp.mean(x, axis=-1, keepdims=True)
    xc = x - mu
    var = jnp.mean(xc * xc, axis=-1, keepdims=True)
    return xc * lax.rsqrt(var + eps) * w + b


def _new_gelu(x):
    c = math.sqrt(2.0 / math.pi)
    return 0.5 * x * (1.0 + jnp.tanh(c * (x + 0.044715 * x * x * x)))


# ------------------------ kernel 1: ln_1 + QKV proj ------------------------

def qkv_kernel(x_ref, ln1w_ref, ln1b_ref, wattn_ref, battn_ref, qkv_ref):
    x = x_ref[...]                                   # (TR, C) f32
    h = _layernorm(x, ln1w_ref[0], ln1b_ref[0]).astype(jnp.bfloat16)
    qkv = jnp.dot(h, wattn_ref[...],                 # bf16 x bf16 -> f32 (MXU)
                  preferred_element_type=jnp.float32) + battn_ref[0]
    # 1/sqrt(hd) is already folded into the Q columns of wattn/battn.
    # Single lane-dense (TR, 3C) store; the q/k/v split happens in XLA.
    qkv_ref[...] = qkv.astype(qkv_ref.dtype)


# ------------------- kernel 2: flash-style causal attention -----------------
# grid = (B, n_head, n_q_tiles, n_kv_tiles); kv is the "arbitrary" reduction
# axis; m/l/acc live in f32 VMEM scratch and persist across kv steps.
# K arrives pre-transposed as an (hd, TKV) panel (lane-dense for hd < 128).

def flash_attn_kernel(q_ref, k_ref, v_ref, o_ref, m_ref, l_ref, acc_ref):
    qi = pl.program_id(2)
    ki = pl.program_id(3)
    TQ = q_ref.shape[-2]
    TKV = k_ref.shape[-1]

    @pl.when(ki == 0)
    def _init():
        m_ref[...] = jnp.full_like(m_ref, NEG_INF)
        l_ref[...] = jnp.zeros_like(l_ref)
        acc_ref[...] = jnp.zeros_like(acc_ref)

    def _update(apply_mask):
        q = q_ref[...]                               # (TQ, hd)  bf16
        k = k_ref[...]                               # (hd, TKV) bf16 (pre-T)
        v = v_ref[...]                               # (TKV, hd) bf16
        s = jnp.dot(q, k, preferred_element_type=jnp.float32)   # (TQ, TKV)
        if apply_mask:
            # Diagonal tile only; TQ == TKV so the mask is purely local.
            row = lax.broadcasted_iota(jnp.int32, (TQ, TKV), 0)
            col = lax.broadcasted_iota(jnp.int32, (TQ, TKV), 1)
            s = jnp.where(row >= col, s, NEG_INF)
        m_prev = m_ref[...]
        m_new = jnp.maximum(m_prev, jnp.max(s, axis=-1, keepdims=True))
        alpha = jnp.exp(m_prev - m_new)
        p = jnp.exp(s - m_new)
        l_ref[...] = alpha * l_ref[...] + jnp.sum(p, axis=-1, keepdims=True)
        acc_ref[...] = alpha * acc_ref[...] + jnp.dot(
            p.astype(v.dtype), v, preferred_element_type=jnp.float32)
        m_ref[...] = m_new

    # Strictly-below-diagonal tiles: no mask arithmetic at all.
    @pl.when(ki < qi)
    def _off_diag():
        _update(apply_mask=False)

    # Diagonal tile: masked update + finalize.  Tiles with ki > qi are
    # causally dead: they run neither branch and (via the clamped index_map)
    # trigger no new K/V DMA.
    @pl.when(ki == qi)
    def _diag():
        _update(apply_mask=True)
        inv_l = pl.reciprocal(l_ref[...], approx=True)   # EUP, not VALU divide
        o_ref[...] = (acc_ref[...] * inv_l).astype(o_ref.dtype)


# --------------- kernel 3: out-proj + residual + ln_2 + MLP -----------------

def proj_mlp_kernel(x_ref, y_ref, wproj_ref, bproj_ref, ln2w_ref, ln2b_ref,
                    wfc_ref, bfc_ref, wfc2_ref, bfc2_ref, o_ref):
    x = x_ref[...]                                   # (TR, C) f32
    y = y_ref[...]                                   # (TR, C) bf16 (attn out)
    proj = jnp.dot(y, wproj_ref[...],
                   preferred_element_type=jnp.float32) + bproj_ref[0]
    x1 = x + proj                                    # residual 1
    h2 = _layernorm(x1, ln2w_ref[0], ln2b_ref[0]).astype(jnp.bfloat16)
    ff = jnp.dot(h2, wfc_ref[...],
                 preferred_element_type=jnp.float32) + bfc_ref[0]
    ff = _new_gelu(ff).astype(jnp.bfloat16)          # f32 tanh (EUP); bf16 MXU operand
    ff = jnp.dot(ff, wfc2_ref[...],
                 preferred_element_type=jnp.float32) + bfc2_ref[0]
    o_ref[...] = (x1 + ff).astype(o_ref.dtype)       # residual 2


# ------------------------------ param prep ----------------------------------

def prepare_params(params, n_head):
    """Fold 1/sqrt(head_dim) into the Q slice of W_attn / b_attn (done once)."""
    C = params["wattn"].shape[0]
    hd = C // n_head
    scale = 1.0 / math.sqrt(hd)
    p = dict(params)
    wattn = params["wattn"].astype(jnp.float32).at[:, :C].multiply(scale)
    p["wattn"] = wattn.astype(params["wattn"].dtype)
    p["battn"] = params["battn"].at[:, :C].multiply(scale)
    return p


# --------------------------------- wrapper ----------------------------------

def block_forward(x, params, n_head):
    """params must already be scale-folded via prepare_params()."""
    B, T, C = x.shape
    assert C % n_head == 0
    hd = C // n_head
    f32, bf16 = jnp.float32, jnp.bfloat16

    TR = min(T, 256)        # row tile for projection / MLP kernels
    TQ = TKV = min(T, 256)  # flash attention q / kv tiles (TQ == TKV required)
    assert T % TR == 0 and T % TQ == 0

    vmem_params = pltpu.CompilerParams(
        dimension_semantics=("parallel", "parallel"),
        vmem_limit_bytes=64 * 1024 * 1024)   # v5e default scoped limit is 16 MiB

    def act_spec(tile, ncols):
        return pl.BlockSpec((pl.Squeezed(), tile, ncols), lambda b, r: (b, r, 0))

    def param_spec(p):
        return pl.BlockSpec(p.shape, lambda b, r: (0, 0))   # all params are 2D

    # ---- kernel 1: ln_1 + QKV projection (single lane-dense qkv output) ----
    qkv_params = [params[k] for k in ("ln1w", "ln1b", "wattn", "battn")]
    qkv = pl.pallas_call(
        qkv_kernel,
        out_shape=jax.ShapeDtypeStruct((B, T, 3 * C), bf16),
        grid=(B, T // TR),
        in_specs=[act_spec(TR, C)] + [param_spec(p) for p in qkv_params],
        out_specs=act_spec(TR, 3 * C),
        compiler_params=vmem_params,
    )(x, *qkv_params)

    # Layout plumbing in XLA (split + head-major; K pre-transposed so the
    # attention kernel reads a lane-dense (hd, TKV) panel, no in-kernel T).
    q, k, v = jnp.split(qkv, 3, axis=-1)
    qh = q.reshape(B, T, n_head, hd).transpose(0, 2, 1, 3)   # (B, nh, T, hd)
    kh = k.reshape(B, T, n_head, hd).transpose(0, 2, 3, 1)   # (B, nh, hd, T)
    vh = v.reshape(B, T, n_head, hd).transpose(0, 2, 1, 3)   # (B, nh, T, hd)

    # ---- kernel 2: flash-style causal attention ----
    nq, nkv = T // TQ, T // TKV
    assert nq == nkv
    q_spec = pl.BlockSpec((pl.Squeezed(), pl.Squeezed(), TQ, hd),
                          lambda b, h, qi, ki: (b, h, qi, 0))
    # Clamp kv index to min(ki, qi): causally dead tiles reuse the previous
    # block and issue no new DMA.
    k_spec = pl.BlockSpec((pl.Squeezed(), pl.Squeezed(), hd, TKV),
                          lambda b, h, qi, ki: (b, h, 0, jnp.minimum(ki, qi)))
    v_spec = pl.BlockSpec((pl.Squeezed(), pl.Squeezed(), TKV, hd),
                          lambda b, h, qi, ki: (b, h, jnp.minimum(ki, qi), 0))
    o_spec = pl.BlockSpec((pl.Squeezed(), pl.Squeezed(), TQ, hd),
                          lambda b, h, qi, ki: (b, h, qi, 0))
    yh = pl.pallas_call(
        flash_attn_kernel,
        out_shape=jax.ShapeDtypeStruct((B, n_head, T, hd), bf16),
        grid=(B, n_head, nq, nkv),
        in_specs=[q_spec, k_spec, v_spec],
        out_specs=o_spec,
        scratch_shapes=[pltpu.VMEM((TQ, 1), f32),     # m (running max)
                        pltpu.VMEM((TQ, 1), f32),     # l (running denom)
                        pltpu.VMEM((TQ, hd), f32)],   # acc
        compiler_params=pltpu.CompilerParams(
            dimension_semantics=("parallel", "parallel", "parallel", "arbitrary")),
    )(qh, kh, vh)
    y = yh.transpose(0, 2, 1, 3).reshape(B, T, C)

    # ---- kernel 3: output projection + residual + ln_2 + MLP + residual ----
    mlp_params = [params[k] for k in ("wproj", "bproj", "ln2w", "ln2b",
                                      "wfc", "bfc", "wfc2", "bfc2")]
    out = pl.pallas_call(
        proj_mlp_kernel,
        out_shape=jax.ShapeDtypeStruct((B, T, C), x.dtype),
        grid=(B, T // TR),
        in_specs=[act_spec(TR, C), act_spec(TR, C)]
                 + [param_spec(p) for p in mlp_params],
        out_specs=act_spec(TR, C),
        compiler_params=vmem_params,
    )(x, y, *mlp_params)
    return out


# ------------------------- pure-JAX reference ------------------------------

def block_reference(x, p, n_head):
    def ln(z, w, b):
        mu = z.mean(-1, keepdims=True)
        var = ((z - mu) ** 2).mean(-1, keepdims=True)
        return (z - mu) / jnp.sqrt(var + 1e-5) * w + b

    f32 = jnp.float32
    B, T, C = x.shape
    hd = C // n_head
    h = ln(x, p["ln1w"][0], p["ln1b"][0])
    qkv = h @ p["wattn"].astype(f32) + p["battn"][0]
    q, k, v = jnp.split(qkv, 3, axis=-1)
    q = q.reshape(B, T, n_head, hd).transpose(0, 2, 1, 3)
    k = k.reshape(B, T, n_head, hd).transpose(0, 2, 1, 3)
    v = v.reshape(B, T, n_head, hd).transpose(0, 2, 1, 3)
    att = jnp.einsum("bhqd,bhkd->bhqk", q, k) / math.sqrt(hd)
    mask = jnp.tril(jnp.ones((T, T), dtype=bool))
    att = jnp.where(mask[None, None], att, -jnp.inf)
    att = jax.nn.softmax(att, axis=-1)
    y = jnp.einsum("bhqk,bhkd->bhqd", att, v)
    y = y.transpose(0, 2, 1, 3).reshape(B, T, C)
    y = y @ p["wproj"].astype(f32) + p["bproj"][0]
    x1 = x + y
    h2 = ln(x1, p["ln2w"][0], p["ln2b"][0])
    ff = h2 @ p["wfc"].astype(f32) + p["bfc"][0]
    ff = 0.5 * ff * (1.0 + jnp.tanh(math.sqrt(2.0 / math.pi) * (ff + 0.044715 * ff ** 3)))
    ff = ff @ p["wfc2"].astype(f32) + p["bfc2"][0]
    return x1 + ff


# --------------------------------- main -------------------------------------

if __name__ == "__main__":
    # Small config implied by the module: seq=8, hidden=32, 4 heads, batch=2.
    B, T, C, n_head = 2, 8, 32, 4
    key = jax.random.PRNGKey(0)
    ks = jax.random.split(key, 9)

    def init_w(k, shape, dtype, scale=0.02):
        return (scale * jax.random.normal(k, shape)).astype(dtype)

    params = {
        # LayerNorm params (ones / zeros), stored as (1, C), f32
        "ln1w": jnp.ones((1, C), jnp.float32),
        "ln1b": jnp.zeros((1, C), jnp.float32),
        "ln2w": jnp.ones((1, C), jnp.float32),
        "ln2b": jnp.zeros((1, C), jnp.float32),
        # Linear weights stored bf16 (MXU-native), biases f32
        "wattn": init_w(ks[0], (C, 3 * C), jnp.bfloat16),
        "battn": init_w(ks[1], (1, 3 * C), jnp.float32),
        "wproj": init_w(ks[2], (C, C), jnp.bfloat16),
        "bproj": init_w(ks[3], (1, C), jnp.float32),
        "wfc":   init_w(ks[4], (C, 4 * C), jnp.bfloat16),
        "bfc":   init_w(ks[5], (1, 4 * C), jnp.float32),
        "wfc2":  init_w(ks[6], (4 * C, C), jnp.bfloat16),
        "bfc2":  init_w(ks[7], (1, C), jnp.float32),
    }

    x = jax.random.normal(ks[8], (B, T, C), jnp.float32)

    kparams = prepare_params(params, n_head)          # scale folded into Q weights
    out = jax.block_until_ready(block_forward(x, kparams, n_head))
    ref = block_reference(x, params, n_head)

    assert out.shape == (B, T, C)
    err = jnp.max(jnp.abs(out - ref))
    # bf16 matmul operands + approx reciprocal vs f32 reference -> loosened tol.
    assert jnp.allclose(out, ref, atol=2e-2, rtol=2e-2), f"max abs err {err}"

    print("KERNEL_OK")
</pallas_src>

<mosaic_0001>
module attributes {stable_mosaic.version = 11 : i64} {
  func.func @qkv_kernel(%arg0: i32, %arg1: i32, %arg2: memref<1x8x32xf32, #tpu.memory_space<vmem>>, %arg3: memref<1x32xf32, #tpu.memory_space<vmem>>, %arg4: memref<1x32xf32, #tpu.memory_space<vmem>>, %arg5: memref<32x96xbf16, #tpu.memory_space<vmem>>, %arg6: memref<1x96xf32, #tpu.memory_space<vmem>>, %arg7: memref<1x8x96xbf16, #tpu.memory_space<vmem>>) attributes {dimension_semantics = [#tpu.dimension_semantics<parallel>, #tpu.dimension_semantics<parallel>], iteration_bounds = array<i64: 2, 1>, scalar_prefetch = 0 : i64, scratch_operands = 0 : i64, tpu.core_type = #tpu.core_type<tc>, window_params = [{transform_indices = @transform_0, window_bounds = array<i64: 1, 8, 32>}, {pipeline_mode = #tpu.pipeline_mode<synchronous>, transform_indices = @transform_1, window_bounds = array<i64: 1, 32>}, {pipeline_mode = #tpu.pipeline_mode<synchronous>, transform_indices = @transform_2, window_bounds = array<i64: 1, 32>}, {pipeline_mode = #tpu.pipeline_mode<synchronous>, transform_indices = @transform_3, window_bounds = array<i64: 32, 96>}, {pipeline_mode = #tpu.pipeline_mode<synchronous>, transform_indices = @transform_4, window_bounds = array<i64: 1, 96>}, {transform_indices = @transform_5, window_bounds = array<i64: 1, 8, 96>}]} {
    %c0 = arith.constant 0 : index
    %c0_0 = arith.constant 0 : index
    %c0_1 = arith.constant 0 : index
    %0 = vector.load %arg2[%c0, %c0_0, %c0_1] : memref<1x8x32xf32, #tpu.memory_space<vmem>>, vector<1x8x32xf32>
    %1 = vector.shape_cast %0 : vector<1x8x32xf32> to vector<8x32xf32>
    %c0_2 = arith.constant 0 : index
    %c0_3 = arith.constant 0 : index
    %2 = vector.load %arg3[%c0_2, %c0_3] : memref<1x32xf32, #tpu.memory_space<vmem>>, vector<1x32xf32>
    %3 = vector.shape_cast %2 : vector<1x32xf32> to vector<32xf32>
    %c0_4 = arith.constant 0 : index
    %c0_5 = arith.constant 0 : index
    %4 = vector.load %arg4[%c0_4, %c0_5] : memref<1x32xf32, #tpu.memory_space<vmem>>, vector<1x32xf32>
    %5 = vector.shape_cast %4 : vector<1x32xf32> to vector<32xf32>
    %cst = arith.constant dense<0.000000e+00> : vector<8xf32>
    %6 = vector.multi_reduction <add>, %1, %cst [1] : vector<8x32xf32> to vector<8xf32>
    %7 = vector.shape_cast %6 : vector<8xf32> to vector<8x1xf32>
    %cst_6 = arith.constant 3.200000e+01 : f32
    %8 = vector.broadcast %cst_6 : f32 to vector<8x1xf32>
    %9 = arith.divf %7, %8 : vector<8x1xf32>
    %10 = vector.broadcast %9 : vector<8x1xf32> to vector<8x32xf32>
    %11 = arith.subf %1, %10 : vector<8x32xf32>
    %12 = arith.mulf %11, %11 : vector<8x32xf32>
    %cst_7 = arith.constant dense<0.000000e+00> : vector<8xf32>
    %13 = vector.multi_reduction <add>, %12, %cst_7 [1] : vector<8x32xf32> to vector<8xf32>
    %14 = vector.shape_cast %13 : vector<8xf32> to vector<8x1xf32>
    %cst_8 = arith.constant 3.200000e+01 : f32
    %15 = vector.broadcast %cst_8 : f32 to vector<8x1xf32>
    %16 = arith.divf %14, %15 : vector<8x1xf32>
    %cst_9 = arith.constant 9.99999974E-6 : f32
    %17 = vector.broadcast %cst_9 : f32 to vector<8x1xf32>
    %18 = arith.addf %16, %17 : vector<8x1xf32>
    %19 = math.rsqrt %18 : vector<8x1xf32>
    %20 = vector.broadcast %19 : vector<8x1xf32> to vector<8x32xf32>
    %21 = arith.mulf %11, %20 : vector<8x32xf32>
    %22 = vector.shape_cast %3 : vector<32xf32> to vector<1x32xf32>
    %23 = vector.broadcast %22 : vector<1x32xf32> to vector<8x32xf32>
    %24 = arith.mulf %21, %23 : vector<8x32xf32>
    %25 = vector.shape_cast %5 : vector<32xf32> to vector<1x32xf32>
    %26 = vector.broadcast %25 : vector<1x32xf32> to vector<8x32xf32>
    %27 = arith.addf %24, %26 : vector<8x32xf32>
    %28 = arith.truncf %27 : vector<8x32xf32> to vector<8x32xbf16>
    %c0_10 = arith.constant 0 : index
    %c0_11 = arith.constant 0 : index
    %29 = vector.load %arg5[%c0_10, %c0_11] : memref<32x96xbf16, #tpu.memory_space<vmem>>, vector<32x96xbf16>
    %cst_12 = arith.constant dense<0.000000e+00> : vector<8x96xf32>
    %30 = tpu.matmul %28, %29, %cst_12 {dimension_numbers = #tpu.dot_dimension_numbers<[1], [0], [0], [1], [0, 0, 1, 1], [], []>} : vector<8x32xbf16>, vector<32x96xbf16>, vector<8x96xf32> -> vector<8x96xf32>
    %c0_13 = arith.constant 0 : index
    %c0_14 = arith.constant 0 : index
    %31 = vector.load %arg6[%c0_13, %c0_14] : memref<1x96xf32, #tpu.memory_space<vmem>>, vector<1x96xf32>
    %32 = vector.shape_cast %31 : vector<1x96xf32> to vector<96xf32>
    %33 = vector.shape_cast %32 : vector<96xf32> to vector<1x96xf32>
    %34 = vector.broadcast %33 : vector<1x96xf32> to vector<8x96xf32>
    %35 = arith.addf %30, %34 : vector<8x96xf32>
    %36 = arith.truncf %35 : vector<8x96xf32> to vector<8x96xbf16>
    %c0_15 = arith.constant 0 : index
    %c0_16 = arith.constant 0 : index
    %c0_17 = arith.constant 0 : index
    %37 = vector.load %arg7[%c0_15, %c0_16, %c0_17] : memref<1x8x96xbf16, #tpu.memory_space<vmem>>, vector<1x8x96xbf16>
    %38 = vector.shape_cast %37 : vector<1x8x96xbf16> to vector<8x96xbf16>
    %39 = vector.shape_cast %36 : vector<8x96xbf16> to vector<1x8x96xbf16>
    tpu.vector_store %arg7[%c0_15, %c0_16, %c0_17], %39 {strides = array<i32>} : memref<1x8x96xbf16, #tpu.memory_space<vmem>>, vector<1x8x96xbf16>,
    return
  }
  func.func @transform_0(%arg0: i32, %arg1: i32) -> (i32, i32, i32) {
    %c0_i32 = arith.constant 0 : i32
    %c0_i32_0 = arith.constant 0 : i32
    return %arg0, %arg1, %c0_i32 : i32, i32, i32
  }
  func.func @transform_1(%arg0: i32, %arg1: i32) -> (i32, i32) {
    %c0_i32 = arith.constant 0 : i32
    %c0_i32_0 = arith.constant 0 : i32
    %c0_i32_1 = arith.constant 0 : i32
    return %c0_i32, %c0_i32_0 : i32, i32
  }
  func.func @transform_2(%arg0: i32, %arg1: i32) -> (i32, i32) {
    %c0_i32 = arith.constant 0 : i32
    %c0_i32_0 = arith.constant 0 : i32
    %c0_i32_1 = arith.constant 0 : i32
    return %c0_i32, %c0_i32_0 : i32, i32
  }
  func.func @transform_3(%arg0: i32, %arg1: i32) -> (i32, i32) {
    %c0_i32 = arith.constant 0 : i32
    %c0_i32_0 = arith.constant 0 : i32
    %c0_i32_1 = arith.constant 0 : i32
    return %c0_i32, %c0_i32_0 : i32, i32
  }
  func.func @transform_4(%arg0: i32, %arg1: i32) -> (i32, i32) {
    %c0_i32 = arith.constant 0 : i32
    %c0_i32_0 = arith.constant 0 : i32
    %c0_i32_1 = arith.constant 0 : i32
    return %c0_i32, %c0_i32_0 : i32, i32
  }
  func.func @transform_5(%arg0: i32, %arg1: i32) -> (i32, i32, i32) {
    %c0_i32 = arith.constant 0 : i32
    %c0_i32_0 = arith.constant 0 : i32
    return %arg0, %arg1, %c0_i32 : i32, i32, i32
  }
}

</mosaic_0001>

<llo_original>
// kernel: tpu_custom_call.1
$region0: #{tpu_custom_call.1}
  #allocation0 [shape = 'u32[]', space=smem, size = 0x4, offset = 0x4, fixed_abs, tag = 'smem constant byte address 0x4 - core index']
  #allocation1 [shape = 'u32[144,128]{1,0:T(1,128)}', space=vmem, size = 0x12000, scoped, tag = 'internal scratch']
  %s0 = inlined_call_operand.hbm [shape: f32[2,8,32], index: 0, kind: input, shape index: {}]
  %s1 = inlined_call_operand.hbm [shape: f32[1,32], index: 1, kind: input, shape index: {}]
  %s2 = inlined_call_operand.hbm [shape: f32[1,32], index: 2, kind: input, shape index: {}]
  %s3 = inlined_call_operand.hbm [shape: bf16[32,96], index: 3, kind: input, shape index: {}]
  %s4 = inlined_call_operand.hbm [shape: f32[1,96], index: 4, kind: input, shape index: {}]
  %s5 = inlined_call_operand.hbm [shape: bf16[2,8,96], index: 5, kind: output, shape index: {}]
  %s6 = sld [smem:[#allocation0]]
  $region73: #{tpu_custom_call.1} parent=0
    _
  %s8 = ssub.s32 1, %s6
  %s9 = scalar_select 0, %s8, %s6
  $region1: #{tpu_custom_call.1} parent=0
    #allocation2 [shape = 'u8[8192]{0}', space=vmem, size = 0x2000, scoped, tag = 'input window, operand 0']
    #allocation3 [shape = 's32[2]{0}', space=sflag, size = 0x8, scoped, tag = 'scoped memory for tpu_custom_call.1']
    #allocation4 [shape = 's32[2]{0}', space=sflag, size = 0x8, scoped, tag = 'scoped memory for tpu_custom_call.1']
    #allocation5 [shape = 'u8[512]{0}', space=vmem, size = 0x400, scoped, tag = 'input window, operand 1, single buffered']
    #allocation6 [shape = 's32[1]{0}', space=sflag, size = 0x4, scoped, tag = 'scoped memory for tpu_custom_call.1']
    #allocation7 [shape = 'u8[512]{0}', space=vmem, size = 0x400, scoped, tag = 'input window, operand 2, single buffered']
    #allocation8 [shape = 'u8[8192]{0}', space=vmem, size = 0x2000, scoped, tag = 'input window, operand 3, single buffered']
    #allocation9 [shape = 's32[1]{0}', space=sflag, size = 0x4, scoped, tag = 'scoped memory for tpu_custom_call.1']
    #allocation10 [shape = 'u8[512]{0}', space=vmem, size = 0x400, scoped, tag = 'input window, operand 4, single buffered']
    #allocation11 [shape = 'u8[4096]{0}', space=vmem, size = 0x1000, scoped, tag = 'output window, operand 0']
    %10 = vsyncpa [#allocation3], 0
    %s11 = scalar_lea.sflag [#allocation3], 1
    %12 = vsyncpa %s11, 0
    %13 = vsyncpa [#allocation6], 0
    %14 = vsyncpa [#allocation9], 0
    %15 = vsyncpa [#allocation4], 0
    %s16 = scalar_lea.sflag [#allocation4], 1
    %17 = vsyncpa %s16, 0
    loop: start=0, step=1, limit=4
    $region2: #{tpu_custom_call.1} parent=1 // loop_pre_header
      _
    $region3: #{tpu_custom_call.1} parent=1 // loop_header
      %s19 = sphi 0, %s23
      %p20 = scmp.ge.s32.totalorder %s19, 4
      %s26 = sphi 0, %s38
      %s27 = sphi 0, %s34
      %s28 = sphi 0, %s26
      %s29 = sphi 0, %s27
      %s30 = sphi 0, %s28
      %s31 = sphi 0, %s29
      %s43 = sphi 0, %s45
      %s46 = sphi 0, %s43
      %s47 = sphi 0, %s46
      %s63 = sphi 0, %s47
      %s67 = sphi 0, %s67
      %s69 = sphi 0, %s67
      %s70 = sphi 0, %s69
      %s84 = sphi 0, %s70
      %s88 = sphi 0, %s88
      %s90 = sphi 0, %s88
      %s91 = sphi 0, %s90
      %s105 = sphi 0, %s91
      %s109 = sphi 0, %s109
      %s111 = sphi 0, %s109
      %s112 = sphi 0, %s111
      %s126 = sphi 0, %s112
      %s130 = sphi 0, %s130
      %s132 = sphi 0, %s130
      %s133 = sphi 0, %s132
      %s147 = sphi 0, %s133
      %s155 = sphi 0, %s157
      %s158 = sphi 0, %s155
      %s159 = sphi 0, %s158
      %s175 = sphi 0, %s159
    $region4: #{tpu_custom_call.1} parent=1 // loop_header_branch
      %22 = sbr.rel (%p20) target = $region8
    $region5: #{tpu_custom_call.1} parent=1 // loop_body
      %s24 = ssub.s32 %s19, 1
      %s25 = ssub.s32 %s19, 2
      %s32 = sadd.s32 1, %s27
      %p33 = scmp.ge.s32.totalorder %s32, 1
      %s34 = scalar_select %p33, 0, %s32
      %s35 = sadd.s32 1, %s26
      %s36 = scalar_select %p33, %s35, %s26
      %p37 = scmp.ge.s32.totalorder %s36, 2
      %s38 = scalar_select %p37, 0, %s36
      %s39 = ssub.s32 %s26, %s38
      %s40 = ssub.s32 %s27, %s34
      %s41 = sor.u32 %s39, %s40
      %p42 = scmp.eq.s32.totalorder %s41, 0
      %s44 = sadd.s32 %s43, 1
      %s45 = scalar_select %p42, %s43, %s44
      %p48 = pneg %p42
      %p49 = scmp.eq.s32.totalorder %s19, 1
      %p50 = por %p48, %p49
      %p51 = scmp.ne.s32.totalorder %s43, %s46
      %p52 = scmp.eq.s32.totalorder %s19, 0
      %p53 = por %p51, %p52
      %p54 = scmp.ne.s32.totalorder %s43, %s46
      %p55 = scmp.eq.s32.totalorder %s24, 1
      %p56 = por %p54, %p55
      %p57 = scmp.ne.s32.totalorder %s46, %s47
      %p58 = scmp.eq.s32.totalorder %s24, 0
      %p59 = por %p57, %p58
      %p60 = scmp.ne.s32.totalorder %s46, %s47
      %p61 = scmp.eq.s32.totalorder %s25, 1
      %p62 = por %p60, %p61
      %p64 = scmp.ne.s32.totalorder %s47, %s63
      %p65 = scmp.eq.s32.totalorder %s25, 0
      %p66 = por %p64, %p65
      %s68 = sadd.s32 %s67, 1
      %p71 = scmp.eq.s32.totalorder %s19, 1
      %p72 = scmp.ne.s32.totalorder %s67, %s69
      %p73 = scmp.eq.s32.totalorder %s19, 0
      %p74 = por %p72, %p73
      %p75 = scmp.ne.s32.totalorder %s67, %s69
      %p76 = scmp.eq.s32.totalorder %s24, 1
      %p77 = por %p75, %p76
      %p78 = scmp.ne.s32.totalorder %s69, %s70
      %p79 = scmp.eq.s32.totalorder %s24, 0
      %p80 = por %p78, %p79
      %p81 = scmp.ne.s32.totalorder %s69, %s70
      %p82 = scmp.eq.s32.totalorder %s25, 1
      %p83 = por %p81, %p82
      %p85 = scmp.ne.s32.totalorder %s70, %s84
      %p86 = scmp.eq.s32.totalorder %s25, 0
      %p87 = por %p85, %p86
      %s89 = sadd.s32 %s88, 1
      %p92 = scmp.eq.s32.totalorder %s19, 1
      %p93 = scmp.ne.s32.totalorder %s88, %s90
      %p94 = scmp.eq.s32.totalorder %s19, 0
      %p95 = por %p93, %p94
      %p96 = scmp.ne.s32.totalorder %s88, %s90
      %p97 = scmp.eq.s32.totalorder %s24, 1
      %p98 = por %p96, %p97
      %p99 = scmp.ne.s32.totalorder %s90, %s91
      %p100 = scmp.eq.s32.totalorder %s24, 0
      %p101 = por %p99, %p100
      %p102 = scmp.ne.s32.totalorder %s90, %s91
      %p103 = scmp.eq.s32.totalorder %s25, 1
      %p104 = por %p102, %p103
      %p106 = scmp.ne.s32.totalorder %s91, %s105
      %p107 = scmp.eq.s32.totalorder %s25, 0
      %p108 = por %p106, %p107
      %s110 = sadd.s32 %s109, 1
      %p113 = scmp.eq.s32.totalorder %s19, 1
      %p114 = scmp.ne.s32.totalorder %s109, %s111
      %p115 = scmp.eq.s32.totalorder %s19, 0
      %p116 = por %p114, %p115
      %p117 = scmp.ne.s32.totalorder %s109, %s111
      %p118 = scmp.eq.s32.totalorder %s24, 1
      %p119 = por %p117, %p118
      %p120 = scmp.ne.s32.totalorder %s111, %s112
      %p121 = scmp.eq.s32.totalorder %s24, 0
      %p122 = por %p120, %p121
      %p123 = scmp.ne.s32.totalorder %s111, %s112
      %p124 = scmp.eq.s32.totalorder %s25, 1
      %p125 = por %p123, %p124
      %p127 = scmp.ne.s32.totalorder %s112, %s126
      %p128 = scmp.eq.s32.totalorder %s25, 0
      %p129 = por %p127, %p128
      %s131 = sadd.s32 %s130, 1
      %p134 = scmp.eq.s32.totalorder %s19, 1
      %p135 = scmp.ne.s32.totalorder %s130, %s132
      %p136 = scmp.eq.s32.totalorder %s19, 0
      %p137 = por %p135, %p136
      %p138 = scmp.ne.s32.totalorder %s130, %s132
      %p139 = scmp.eq.s32.totalorder %s24, 1
      %p140 = por %p138, %p139
      %p141 = scmp.ne.s32.totalorder %s132, %s133
      %p142 = scmp.eq.s32.totalorder %s24, 0
      %p143 = por %p141, %p142
      %p144 = scmp.ne.s32.totalorder %s132, %s133
      %p145 = scmp.eq.s32.totalorder %s25, 1
      %p146 = por %p144, %p145
      %p148 = scmp.ne.s32.totalorder %s133, %s147
      %p149 = scmp.eq.s32.totalorder %s25, 0
      %p150 = por %p148, %p149
      %s151 = ssub.s32 %s26, %s38
      %s152 = ssub.s32 %s27, %s34
      %s153 = sor.u32 %s151, %s152
      %p154 = scmp.eq.s32.totalorder %s153, 0
      %s156 = sadd.s32 %s155, 1
      %s157 = scalar_select %p154, %s155, %s156
      %p160 = pneg %p154
      %p161 = scmp.eq.s32.totalorder %s19, 1
      %p162 = por %p160, %p161
      %p163 = scmp.ne.s32.totalorder %s155, %s158
      %p164 = scmp.eq.s32.totalorder %s19, 0
      %p165 = por %p163, %p164
      %p166 = scmp.ne.s32.totalorder %s155, %s158
      %p167 = scmp.eq.s32.totalorder %s24, 1
      %p168 = por %p166, %p167
      %p169 = scmp.ne.s32.totalorder %s158, %s159
      %p170 = scmp.eq.s32.totalorder %s24, 0
      %p171 = por %p169, %p170
      %p172 = scmp.ne.s32.totalorder %s158, %s159
      %p173 = scmp.eq.s32.totalorder %s25, 1
      %p174 = por %p172, %p173
      %p176 = scmp.ne.s32.totalorder %s159, %s175
      %p177 = scmp.eq.s32.totalorder %s25, 0
      %p178 = por %p176, %p177
      %p179 = scmp.le.s32.totalorder 1, %s19
      %p180 = scmp.lt.s32.totalorder %s19, 3
      %p181 = pnand %p179, %p180
      %p182 = pneg %p181
      // Predicated region
      $region9: #{tpu_custom_call.1} parent=5 // pred_check
        _
      $region10: #{tpu_custom_call.1} parent=5 // pred_check_branch
        %184 = sbr.rel (%p181) target = $region12
      $region11: #{tpu_custom_call.1} parent=5 // pred_region
        %s185 = ssub.s32 %s19, 1
        // Predicated region
        $region13: #{tpu_custom_call.1} parent=11 // pred_check
          %p186 = pneg %p80
        $region14: #{tpu_custom_call.1} parent=11 // pred_check_branch
          %188 = sbr.rel (%p186) target = $region16
        $region15: #{tpu_custom_call.1} parent=11 // pred_region
          %s190 = ssub.s32 16, 16
          %191 = vsyncadd [#allocation6], %s190
          %s193 = sshll.u32 [#allocation5], 4
          %s194 = int_to_ptr.vmem [resolvable:$true] %s193
          %196 = dma.hbm_to_vmem [thread:$0]  %s1, 16, %s194, [#allocation6]
        $region16: #{tpu_custom_call.1} parent=11 // pred_fallthru
          _
        // Predicated region
        $region17: #{tpu_custom_call.1} parent=11 // pred_check
          %p197 = pneg %p101
        $region18: #{tpu_custom_call.1} parent=11 // pred_check_branch
          %199 = sbr.rel (%p197) target = $region20
        $region19: #{tpu_custom_call.1} parent=11 // pred_region
          %s201 = ssub.s32 16, 16
          %202 = vsyncadd [#allocation6], %s201
          %s204 = sshll.u32 [#allocation7], 4
          %s205 = int_to_ptr.vmem [resolvable:$true] %s204
          %207 = dma.hbm_to_vmem [thread:$0]  %s2, 16, %s205, [#allocation6]
        $region20: #{tpu_custom_call.1} parent=11 // pred_fallthru
          _
        // Predicated region
        $region21: #{tpu_custom_call.1} parent=11 // pred_check
          %p208 = pneg %p122
        $region22: #{tpu_custom_call.1} parent=11 // pred_check_branch
          %210 = sbr.rel (%p208) target = $region24
        $region23: #{tpu_custom_call.1} parent=11 // pred_region
          %s212 = ssub.s32 256, 256
          %213 = vsyncadd [#allocation9], %s212
          %s214 = sshll.u32 [#allocation8], 4
          %s215 = int_to_ptr.vmem [resolvable:$true] %s214
          %220 = dma.hbm_to_vmem [thread:$0]  %s3, 256, %s215, [#allocation9], 64, 64, 4
        $region24: #{tpu_custom_call.1} parent=11 // pred_fallthru
          _
        // Predicated region
        $region25: #{tpu_custom_call.1} parent=11 // pred_check
          %p221 = pneg %p143
        $region26: #{tpu_custom_call.1} parent=11 // pred_check_branch
          %223 = sbr.rel (%p221) target = $region28
        $region27: #{tpu_custom_call.1} parent=11 // pred_region
          %s225 = ssub.s32 16, 16
          %226 = vsyncadd [#allocation9], %s225
          %s228 = sshll.u32 [#allocation10], 4
          %s229 = int_to_ptr.vmem [resolvable:$true] %s228
          %231 = dma.hbm_to_vmem [thread:$0]  %s4, 16, %s229, [#allocation9]
        $region28: #{tpu_custom_call.1} parent=11 // pred_fallthru
          _
      $region12: #{tpu_custom_call.1} parent=5 // pred_fallthru
        _
      %p232 = scmp.lt.s32.totalorder %s19, 2
      // Predicated region
      $region29: #{tpu_custom_call.1} parent=5 // pred_check
        %p233 = pneg %p232
      $region30: #{tpu_custom_call.1} parent=5 // pred_check_branch
        %235 = sbr.rel (%p233) target = $region32
      $region31: #{tpu_custom_call.1} parent=5 // pred_region
        // Predicated region
        $region33: #{tpu_custom_call.1} parent=31 // pred_check
          %p236 = pneg %p53
        $region34: #{tpu_custom_call.1} parent=31 // pred_check_branch
          %238 = sbr.rel (%p236) target = $region36
        $region35: #{tpu_custom_call.1} parent=31 // pred_region
          %s239 = sand.u32 %s43, 1
          %s240 = scalar_lea.sflag [#allocation3], %s239
          %s241 = sand.u32 %s43, 1
          %s242 = smul.addr %s241, 8
          %s243 = scalar_lea.vmem [#allocation2], %s242
          %s245 = ssub.s32 128, 128
          %246 = vsyncadd %s240, %s245
          %s247 = sadd.s32 %s27, %s26
          %s248 = smul.addr %s247, 128
          %s249 = scalar_lea.hbm %s0, %s248
          %s251 = sshll.u32 %s243, 4
          %s252 = int_to_ptr.vmem [resolvable:$true] %s251
          %254 = dma.hbm_to_vmem [thread:$0]  %s249, 128, %s252, %s240
        $region36: #{tpu_custom_call.1} parent=31 // pred_fallthru
          _
      $region32: #{tpu_custom_call.1} parent=5 // pred_fallthru
        _
      %p255 = scmp.le.s32.totalorder 1, %s19
      %p256 = scmp.lt.s32.totalorder %s19, 3
      %p257 = pnand %p255, %p256
      %p258 = pneg %p257
      // Predicated region
      $region37: #{tpu_custom_call.1} parent=5 // pred_check
        _
      $region38: #{tpu_custom_call.1} parent=5 // pred_check_branch
        %260 = sbr.rel (%p257) target = $region40
      $region39: #{tpu_custom_call.1} parent=5 // pred_region
        %s261 = ssub.s32 %s19, 1
        %s262 = sand.u32 %s46, 1
        %s263 = scalar_lea.sflag [#allocation3], %s262
        %s264 = sand.u32 %s46, 1
        %s265 = smul.addr %s264, 8
        %s266 = scalar_lea.vmem [#allocation2], %s265
        // Predicated region
        $region41: #{tpu_custom_call.1} parent=39 // pred_check
          %p267 = pneg %p59
        $region42: #{tpu_custom_call.1} parent=39 // pred_check_branch
          %269 = sbr.rel (%p267) target = $region44
        $region43: #{tpu_custom_call.1} parent=39 // pred_region
          %270 = dma.done %s263, 128
        $region44: #{tpu_custom_call.1} parent=39 // pred_fallthru
          _
        // Predicated region
        $region45: #{tpu_custom_call.1} parent=39 // pred_check
          %p271 = pneg %p80
        $region46: #{tpu_custom_call.1} parent=39 // pred_check_branch
          %273 = sbr.rel (%p271) target = $region48
        $region47: #{tpu_custom_call.1} parent=39 // pred_region
          %274 = dma.done [#allocation6], 16
        $region48: #{tpu_custom_call.1} parent=39 // pred_fallthru
          _
        // Predicated region
        $region49: #{tpu_custom_call.1} parent=39 // pred_check
          %p275 = pneg %p101
        $region50: #{tpu_custom_call.1} parent=39 // pred_check_branch
          %277 = sbr.rel (%p275) target = $region52
        $region51: #{tpu_custom_call.1} parent=39 // pred_region
          %278 = dma.done [#allocation6], 16
        $region52: #{tpu_custom_call.1} parent=39 // pred_fallthru
          _
        // Predicated region
        $region53: #{tpu_custom_call.1} parent=39 // pred_check
          %p279 = pneg %p122
        $region54: #{tpu_custom_call.1} parent=39 // pred_check_branch
          %281 = sbr.rel (%p279) target = $region56
        $region55: #{tpu_custom_call.1} parent=39 // pred_region
          %282 = dma.done [#allocation9], 256
        $region56: #{tpu_custom_call.1} parent=39 // pred_fallthru
          _
        // Predicated region
        $region57: #{tpu_custom_call.1} parent=39 // pred_check
          %p283 = pneg %p143
        $region58: #{tpu_custom_call.1} parent=39 // pred_check_branch
          %285 = sbr.rel (%p283) target = $region60
        $region59: #{tpu_custom_call.1} parent=39 // pred_region
          %286 = dma.done [#allocation9], 16
        $region60: #{tpu_custom_call.1} parent=39 // pred_fallthru
          _
        %s287 = sand.u32 %s46, 1
        %s288 = scalar_lea.sflag [#allocation3], %s287
        %s289 = sand.u32 %s46, 1
        %s290 = smul.addr %s289, 8
        %s291 = scalar_lea.vmem [#allocation2], %s290
        %p292 = pneg %p59
        %p293 = pneg %p56
        %p294 = pneg %p80
        %p295 = pneg %p77
        %p296 = pneg %p101
        %p297 = pneg %p98
        %p298 = pneg %p122
        %p299 = pneg %p119
        %p300 = pneg %p143
        %p301 = pneg %p140
        %p302 = pneg %p171
        %p303 = pneg %p168
        %s304 = sand.u32 %s158, 1
        %s305 = scalar_lea.sflag [#allocation4], %s304
        %s306 = sand.u32 %s158, 1
        %s307 = smul.addr %s306, 4
        %s308 = scalar_lea.vmem [#allocation11], %s307
        %v310 = vld [vmem:[%s266] sm:$0xff]
        %v311 = vld [vmem:[#allocation5] sm:$0x1]
        %v312 = vld [vmem:[#allocation7] sm:$0x1]
        %vm313 = vcmask 261120
        %v314 = vsel %vm313, %v310, 0.0
        %315 = vadd.xlane.f32.xlu0 %v314
        %v316 = vpop.xlane.xlu0 %315
        %v317 = vrcp.pop 32.0
        %v318 = vmul.f32 %v316, %v317
        %v319 = vsub.f32 %v310, %v318
        %v320 = vmul.f32 %v319, %v319
        %v321 = vsel %vm313, %v320, 0.0
        %322 = vadd.xlane.f32.xlu0 %v321
        %v323 = vpop.xlane.xlu0 %322
        %v324 = vmul.f32 %v323, %v317
        %v325 = vadd.f32 %v324, 1e-05
        %v326 = vrsqrt.pop %v325
        %v327 = vmul.f32 %v319, %v326
        %v329 = vlaneseq
        %v330 = vshrl.u32 %v329, 7
        %v331 = vsub.s32 0, %v330
        %v332 = vrot.slane %v311, %v331
        %v334 = vmul.f32 %v327, %v332
        %v336 = vlaneseq
        %v337 = vshrl.u32 %v336, 7
        %v338 = vsub.s32 0, %v337
        %v339 = vrot.slane %v312, %v338
        %v341 = vadd.f32 %v334, %v339
        %v342 = vpack.c.bf16 %v341, %v341
        %v343 = vld [vmem:[#allocation8] sm:$0xf]
        %v344 = vld [vmem:[#allocation8 + $0x4] sm:$0xf]
        %v345 = vld [vmem:[#allocation8 + $0x8] sm:$0xf]
        %v346 = vld [vmem:[#allocation8 + $0xc] sm:$0xf]
        %v347 = vld [vmem:[#allocation10] sm:$0x1]
        %v349 = vlaneseq
        %v350 = vshrl.u32 %v349, 7
        %v351 = vsub.s32 0, %v350
        %v352 = vrot.slane %v347, %v351
        %v358 = vunpack.c.l.b16 %v343
        %v359 = vunpack.c.l.b16 %v344
        %v360 = vunpack.c.l.b16 %v345
        %v361 = vunpack.c.l.b16 %v346
        %v362 = vpack.c.b16 %v359, %v358
        %v363 = vpack.c.b16 %v361, %v360
        %v367 = vsel %vm313, %v342, 0
        %369 = vmatprep.subr.bf16.mxu0 0
        %370 = vmatpush1.bf16.msra.mxu0 %v362
        %371 = vmatprep.subr.bf16.mxu0 0
        %372 = vmatpush1.bf16.msra.mxu0 %v363
        %373 = vmatprep.subr.bf16.mxu0 0
        %374 = vmatpush1.bf16.msra.mxu0 0
        %375 = vmatprep.subr.bf16.mxu0 0
        %376 = vmatpush1.bf16.msra.mxu0 0
        %377 = vmatprep.subr.bf16.mxu0 0
        %378 = vmatpush1.bf16.msra.mxu0 0
        %379 = vmatprep.subr.bf16.mxu0 0
        %380 = vmatpush1.bf16.msra.mxu0 0
        %381 = vmatprep.subr.bf16.mxu0 0
        %382 = vmatpush1.bf16.msra.mxu0 0
        %383 = vmatprep.subr.bf16.mxu0 0
        %384 = vmatpush1.bf16.msra.mxu0 0
        %385 = vmatprep.subr.bf16.mxu0 0
        %386 = vmatpush1.bf16.msra.mxu0 0
        %387 = vmatprep.subr.bf16.mxu0 0
        %388 = vmatpush1.bf16.msra.mxu0 0
        %389 = vmatprep.subr.bf16.mxu0 0
        %390 = vmatpush1.bf16.msra.mxu0 0
        %391 = vmatprep.subr.bf16.mxu0 0
        %392 = vmatpush1.bf16.msra.mxu0 0
        %393 = vmatprep.subr.bf16.mxu0 0
        %394 = vmatpush1.bf16.msra.mxu0 0
        %395 = vmatprep.subr.bf16.mxu0 0
        %396 = vmatpush1.bf16.msra.mxu0 0
        %397 = vmatprep.subr.bf16.mxu0 0
        %398 = vmatpush1.bf16.msra.mxu0 0
        %399 = vmatprep.subr.bf16.mxu0 0
        %400 = vmatpush1.bf16.msra.mxu0 0
        %401 = vmatprep.mubr.bf16.mxu0 0
        %402 = vmatmul.mubr.bf16.gmra.mrb[0].mxu0 %v367
        %v403 = vpop.f32.mrb[0].mxu0
        %v404 = vadd.f32 %v352, %v403
        %v405 = vpop.f32.mrb[0].mxu0
        %v406 = vpop.f32.mrb[0].mxu0
        %v407 = vpop.f32.mrb[0].mxu0
        %408 = vdwg.mxu0
        %v409 = vpack.c.bf16 %v404, %v404
        %vm410 = vcmask 781312
        %411 = vst.msk [vmem:[%s308] sm:$0xf] %vm410, %v409
        %s412 = sand.u32 %s158, 1
        %s413 = scalar_lea.sflag [#allocation4], %s412
        %s414 = sand.u32 %s158, 1
        %s415 = smul.addr %s414, 4
        %s416 = scalar_lea.vmem [#allocation11], %s415
        // Predicated region
        $region61: #{tpu_custom_call.1} parent=39 // pred_check
          %p417 = pneg %p168
        $region62: #{tpu_custom_call.1} parent=39 // pred_check_branch
          %419 = sbr.rel (%p417) target = $region64
        $region63: #{tpu_custom_call.1} parent=39 // pred_region
          %s421 = ssub.s32 64, 64
          %422 = vsyncadd %s413, %s421
          %s423 = sadd.s32 %s29, %s28
          %s424 = smul.addr %s423, 64
          %s425 = scalar_lea.hbm %s5, %s424
          %s427 = sshll.u32 %s416, 4
          %s428 = int_to_ptr.vmem [resolvable:$true] %s427
          %430 = dma.vmem_to_hbm [thread:$0]  %s428, 64, %s425, %s413
        $region64: #{tpu_custom_call.1} parent=39 // pred_fallthru
          _
      $region40: #{tpu_custom_call.1} parent=5 // pred_fallthru
        _
      %p431 = scmp.le.s32.totalorder 2, %s19
      // Predicated region
      $region65: #{tpu_custom_call.1} parent=5 // pred_check
        %p432 = pneg %p431
      $region66: #{tpu_custom_call.1} parent=5 // pred_check_branch
        %434 = sbr.rel (%p432) target = $region68
      $region67: #{tpu_custom_call.1} parent=5 // pred_region
        %s435 = ssub.s32 %s19, 2
        // Predicated region
        $region69: #{tpu_custom_call.1} parent=67 // pred_check
          %p436 = pneg %p174
        $region70: #{tpu_custom_call.1} parent=67 // pred_check_branch
          %438 = sbr.rel (%p436) target = $region72
        $region71: #{tpu_custom_call.1} parent=67 // pred_region
          %s439 = sand.u32 %s159, 1
          %s440 = scalar_lea.sflag [#allocation4], %s439
          %s441 = sand.u32 %s159, 1
          %s442 = smul.addr %s441, 4
          %s443 = scalar_lea.vmem [#allocation11], %s442
          %444 = dma.done %s440, 64
        $region72: #{tpu_custom_call.1} parent=67 // pred_fallthru
          _
      $region68: #{tpu_custom_call.1} parent=5 // pred_fallthru
        _
    $region6: #{tpu_custom_call.1} parent=1 // loop_footer
      %s23 = sadd.s32 1, %s19
    $region7: #{tpu_custom_call.1} parent=1 // loop_footer_branch
      %18 = sbr.rel target = $region3
    $region8: #{tpu_custom_call.1} parent=1 // loop_exit
      _
    %445 = vsyncpa [#allocation3], 1
    %s446 = scalar_lea.sflag [#allocation3], 1
    %447 = vsyncpa %s446, 1
    %448 = vsyncpa [#allocation6], 1
    %449 = vsyncpa [#allocation9], 1
    %450 = vsyncpa [#allocation4], 1
    %s451 = scalar_lea.sflag [#allocation4], 1
    %452 = vsyncpa %s451, 1

</llo_original>
